<compile_context>
chip_gen: v7x
topology: tpu7x:2x2x1
jax: 0.10.0
libtpu: 0.0.40
codegen_flags: <defaults>
</compile_context>

<pallas_src>
import jax
import jax.numpy as jnp
from jax.experimental import pallas as pl
from jax.experimental.pallas import tpu as pltpu


def _mlp_kernel(x_ref, w1_ref, b1_ref, w2_ref, b2_ref, o_ref, h_acc):
    k = pl.program_id(1)

    @pl.when(k == 0)
    def _():
        h_acc[...] = jnp.zeros_like(h_acc)

    # Layer 1 partial product on the MXU: contract last dims of
    # W1(H, KD)bf16 and x(TB, KD)bf16 -> (H, TB) f32 accumulate.
    # x arrives in f32 and is cast to bf16 here (VPU) - no wrapper pass over x.
    x_b = x_ref[...].astype(jnp.bfloat16)
    h_acc[...] += jax.lax.dot_general(
        w1_ref[...], x_b,
        dimension_numbers=(((1,), (1,)), ((), ())),
        preferred_element_type=jnp.float32)

    @pl.when(k == pl.num_programs(1) - 1)
    def _():
        # b1 is an (H, 1) column; broadcasts over the TB lanes. Sigmoid on EUP.
        h = jax.nn.sigmoid(h_acc[...] + b1_ref[...])                 # (H, TB) f32
        # Layer 2 on the MXU in its natural orientation: (1, H) @ (H, TB).
        z = jnp.dot(w2_ref[...], h, preferred_element_type=jnp.float32)  # (1, TB)
        z = z + b2_ref[0]                                             # scalar bias (SMEM)
        o_ref[...] = jax.nn.sigmoid(z).astype(o_ref.dtype)


def _round_up(v, m):
    return (v + m - 1) // m * m


def _pick_batch_tile(batch, d):
    """Batch lives on the output lane axis -> a partial tile must be a multiple
    of 128; otherwise take the whole batch in a single step."""
    if batch % 128 != 0 or batch < 256:
        # TODO(synk): pad B up to a multiple of 128 for very large, ragged
        # batches instead of falling back to a single whole-batch tile.
        return batch
    # Keep each (double/triple-buffered) f32 x tile comfortably small.
    max_tile_by_vmem = max(128, (8 * 1024 * 1024) // max(d * 4, 1) // 128 * 128)
    # Prefer >= 4 grid steps (2 per TensorCore on v7x), else >= 2 steps, with
    # the largest qualifying tile (amortizes per-step overhead on v5e/v6e).
    for min_steps in (4, 2):
        for t in (2048, 1024, 512, 256, 128):
            if t <= max_tile_by_vmem and batch % t == 0 and batch // t >= min_steps:
                return t
    return batch


def _pick_k_tile(d):
    """Reduction tile over the input-feature axis (lane axis of the x block)."""
    if d % 128 != 0 or d <= 512:
        return d
    for t in (512, 256, 128):
        if d % t == 0:
            return t
    return d


def _vmem_limit_bytes(tb, kd, h):
    lane = lambda n: _round_up(max(n, 1), 128)
    sub = lambda n: _round_up(max(n, 1), 8)
    x_buf = 2 * sub(tb) * lane(kd) * 4          # double-buffered f32 x tile
    w1_buf = 2 * sub(h) * lane(kd) * 2          # double-buffered bf16 W1 tile
    b1_buf = 2 * sub(h) * 128 * 4
    w2_buf = 2 * 8 * lane(h) * 4
    out_buf = 2 * 8 * lane(tb) * 4
    acc = sub(h) * lane(tb) * 4                 # (H, TB) f32 accumulator scratch
    est = x_buf + w1_buf + b1_buf + w2_buf + out_buf + acc
    return int(min(max(2 * est + (4 << 20), 32 << 20), 100 << 20))


def mlp_forward(x, w1, b1, w2, b2, *, batch_tile=None, k_tile=None):
    """x: [B, D]; w1: [H, D]; b1: [H]; w2: [1, H]; b2: [1]  ->  [B, 1]."""
    B, D = x.shape
    H, D2 = w1.shape
    assert D == D2 and b1.shape == (H,) and w2.shape == (1, H) and b2.shape == (1,)

    TB = batch_tile if batch_tile is not None else _pick_batch_tile(B, D)
    KD = k_tile if k_tile is not None else _pick_k_tile(D)
    assert B % TB == 0 and (TB == B or TB % 128 == 0), "bad batch_tile"
    assert D % KD == 0 and (KD == D or KD % 128 == 0), "bad k_tile"

    # Parameter-side (tiny, one-time) layout prep; x is passed through untouched.
    w1_b = w1.astype(jnp.bfloat16)                     # (H, D) streamed over K
    b1_col = b1.reshape(H, 1).astype(jnp.float32)      # (H, 1)
    w2_row = w2.astype(jnp.float32)                    # (1, H)
    b2_s = b2.astype(jnp.float32)                      # (1,) scalar -> SMEM

    # TODO(synk): for very large H additionally tile H (third grid axis with a
    # (1, TB) z-accumulator) so the (H, TB) scratch stays bounded on v7x.

    grid = (B // TB, D // KD)
    flops = int(2 * B * D * H + 2 * B * H)
    transcendentals = int(B * H + B)
    bytes_accessed = int(B * D * 4 + H * D * 2 + (2 * H + 1) * 4 + B * 4)

    out_row = pl.pallas_call(
        _mlp_kernel,
        out_shape=jax.ShapeDtypeStruct((1, B), jnp.float32),
        grid_spec=pltpu.PrefetchScalarGridSpec(
            num_scalar_prefetch=0,
            grid=grid,
            in_specs=[
                pl.BlockSpec((TB, KD), lambda i, k: (i, k)),        # x, natural (B, D) f32
                pl.BlockSpec((H, KD), lambda i, k: (0, k)),         # W1 bf16, streamed over K
                pl.BlockSpec((H, 1), lambda i, k: (0, 0)),          # b1 column
                pl.BlockSpec((1, H), lambda i, k: (0, 0)),          # w2 row
                pl.BlockSpec(memory_space=pltpu.MemorySpace.SMEM),  # b2 scalar
            ],
            out_specs=pl.BlockSpec((1, TB), lambda i, k: (0, i)),   # lane-dense output row
            scratch_shapes=[pltpu.VMEM((H, TB), jnp.float32)],      # layer-1 accumulator
        ),
        compiler_params=pltpu.CompilerParams(
            dimension_semantics=("parallel", "arbitrary"),
            vmem_limit_bytes=_vmem_limit_bytes(TB, KD, H),
        ),
        cost_estimate=pl.CostEstimate(
            flops=flops,
            transcendentals=transcendentals,
            bytes_accessed=bytes_accessed,
        ),
    )(x, w1_b, b1_col, w2_row, b2_s)

    return out_row.reshape(B, 1).astype(x.dtype)


def mlp_reference(x, w1, b1, w2, b2):
    """Pure-JAX reference matching the kernel's precision choices
    (bf16 layer-1 matmul with f32 accumulate, f32 layer 2)."""
    h = jax.lax.dot_general(
        x.astype(jnp.bfloat16), w1.astype(jnp.bfloat16),
        dimension_numbers=(((1,), (1,)), ((), ())),
        preferred_element_type=jnp.float32) + b1
    h = jax.nn.sigmoid(h)
    z = jnp.dot(h, w2.T.astype(jnp.float32), preferred_element_type=jnp.float32) + b2
    return jax.nn.sigmoid(z)


def init_params(key, input_size, hidden_size):
    """Deterministic init mimicking nn.Linear's U(-1/sqrt(fan_in), 1/sqrt(fan_in)),
    in PyTorch weight layout (out_features, in_features)."""
    k1, k2, k3, k4 = jax.random.split(key, 4)
    bound1 = 1.0 / (input_size ** 0.5)
    bound2 = 1.0 / (hidden_size ** 0.5)
    w1 = jax.random.uniform(k1, (hidden_size, input_size), jnp.float32, -bound1, bound1)
    b1 = jax.random.uniform(k2, (hidden_size,), jnp.float32, -bound1, bound1)
    w2 = jax.random.uniform(k3, (1, hidden_size), jnp.float32, -bound2, bound2)
    b2 = jax.random.uniform(k4, (1,), jnp.float32, -bound2, bound2)
    return w1, b1, w2, b2


if __name__ == "__main__":
    key = jax.random.PRNGKey(0)
    kx, kp, kx2, kx3, kp3 = jax.random.split(key, 5)

    # 1) Small shapes consistent with the module.
    batch, input_size, hidden_size = 8, 16, 32
    x = jax.random.normal(kx, (batch, input_size), dtype=jnp.float32)
    w1, b1, w2, b2 = init_params(kp, input_size, hidden_size)
    out = jax.block_until_ready(mlp_forward(x, w1, b1, w2, b2))
    ref = mlp_reference(x, w1, b1, w2, b2)
    assert out.shape == (batch, 1)
    assert jnp.allclose(out, ref, atol=1e-4, rtol=1e-4)

    # 2) Larger batch -> multi-step, pipelined / megacore-parallel batch grid.
    big_batch = 1024
    x2 = jax.random.normal(kx2, (big_batch, input_size), dtype=jnp.float32)
    out2 = jax.block_until_ready(mlp_forward(x2, w1, b1, w2, b2))
    ref2 = mlp_reference(x2, w1, b1, w2, b2)
    assert out2.shape == (big_batch, 1)
    assert jnp.allclose(out2, ref2, atol=1e-4, rtol=1e-4)

    # 3) Exercise the K-tiled (reduction-over-D) accumulation path explicitly.
    b3, d3, h3 = 256, 256, 64
    x3 = jax.random.normal(kx3, (b3, d3), dtype=jnp.float32)
    w1_3, b1_3, w2_3, b2_3 = init_params(kp3, d3, h3)
    out3 = jax.block_until_ready(
        mlp_forward(x3, w1_3, b1_3, w2_3, b2_3, batch_tile=128, k_tile=128))
    ref3 = mlp_reference(x3, w1_3, b1_3, w2_3, b2_3)
    assert out3.shape == (b3, 1)
    assert jnp.allclose(out3, ref3, atol=1e-4, rtol=1e-4)

    print("KERNEL_OK")
</pallas_src>

<mosaic_0001>
module attributes {stable_mosaic.version = 11 : i64} {
  func.func @_mlp_kernel(%arg0: i32, %arg1: i32, %arg2: memref<8x16xf32, #tpu.memory_space<vmem>>, %arg3: memref<32x16xbf16, #tpu.memory_space<vmem>>, %arg4: memref<32x1xf32, #tpu.memory_space<vmem>>, %arg5: memref<1x32xf32, #tpu.memory_space<vmem>>, %arg6: memref<1xf32, #tpu.memory_space<smem>>, %arg7: memref<1x8xf32, #tpu.memory_space<vmem>>, %arg8: memref<32x8xf32, #tpu.memory_space<vmem>>) attributes {dimension_semantics = [#tpu.dimension_semantics<parallel>, #tpu.dimension_semantics<arbitrary>], iteration_bounds = array<i64: 1, 1>, scalar_prefetch = 0 : i64, scratch_operands = 1 : i64, tpu.core_type = #tpu.core_type<tc>, window_params = [{transform_indices = @transform_0, window_bounds = array<i64: 8, 16>}, {transform_indices = @transform_1, window_bounds = array<i64: 32, 16>}, {pipeline_mode = #tpu.pipeline_mode<synchronous>, transform_indices = @transform_2, window_bounds = array<i64: 32, 1>}, {pipeline_mode = #tpu.pipeline_mode<synchronous>, transform_indices = @transform_3, window_bounds = array<i64: 1, 32>}, {transform_indices = @transform_4, window_bounds = array<i64: 1>}, {transform_indices = @transform_5, window_bounds = array<i64: 1, 8>}]} {
    %c0_i32 = arith.constant 0 : i32
    %0 = arith.cmpi eq, %arg1, %c0_i32 : i32
    %1 = arith.extui %0 : i1 to i32
    %c0_i32_0 = arith.constant 0 : i32
    %2 = arith.cmpi ne, %1, %c0_i32_0 : i32
    scf.if %2 {
      %cst_10 = arith.constant 0.000000e+00 : f32
      %13 = vector.broadcast %cst_10 : f32 to vector<32x8xf32>
      %c0_11 = arith.constant 0 : index
      %c0_12 = arith.constant 0 : index
      %14 = vector.load %arg8[%c0_11, %c0_12] : memref<32x8xf32, #tpu.memory_space<vmem>>, vector<32x8xf32>
      tpu.vector_store %arg8[%c0_11, %c0_12], %13 {strides = array<i32>} : memref<32x8xf32, #tpu.memory_space<vmem>>, vector<32x8xf32>,
    } else {
    }
    %c0 = arith.constant 0 : index
    %c0_1 = arith.constant 0 : index
    %3 = vector.load %arg2[%c0, %c0_1] : memref<8x16xf32, #tpu.memory_space<vmem>>, vector<8x16xf32>
    %4 = arith.truncf %3 : vector<8x16xf32> to vector<8x16xbf16>
    %c0_2 = arith.constant 0 : index
    %c0_3 = arith.constant 0 : index
    %5 = vector.load %arg8[%c0_2, %c0_3] : memref<32x8xf32, #tpu.memory_space<vmem>>, vector<32x8xf32>
    %c0_4 = arith.constant 0 : index
    %c0_5 = arith.constant 0 : index
    %6 = vector.load %arg3[%c0_4, %c0_5] : memref<32x16xbf16, #tpu.memory_space<vmem>>, vector<32x16xbf16>
    %cst = arith.constant dense<0.000000e+00> : vector<32x8xf32>
    %7 = tpu.matmul %6, %4, %cst {dimension_numbers = #tpu.dot_dimension_numbers<[1], [1], [0], [0], [0, 0, 1, 0], [], []>} : vector<32x16xbf16>, vector<8x16xbf16>, vector<32x8xf32> -> vector<32x8xf32>
    %8 = arith.addf %5, %7 : vector<32x8xf32>
    %c0_6 = arith.constant 0 : index
    %c0_7 = arith.constant 0 : index
    %9 = vector.load %arg8[%c0_6, %c0_7] : memref<32x8xf32, #tpu.memory_space<vmem>>, vector<32x8xf32>
    tpu.vector_store %arg8[%c0_6, %c0_7], %8 {strides = array<i32>} : memref<32x8xf32, #tpu.memory_space<vmem>>, vector<32x8xf32>,
    %c0_i32_8 = arith.constant 0 : i32
    %10 = arith.cmpi eq, %arg1, %c0_i32_8 : i32
    %11 = arith.extui %10 : i1 to i32
    %c0_i32_9 = arith.constant 0 : i32
    %12 = arith.cmpi ne, %11, %c0_i32_9 : i32
    scf.if %12 {
      %c0_10 = arith.constant 0 : index
      %c0_11 = arith.constant 0 : index
      %13 = vector.load %arg8[%c0_10, %c0_11] : memref<32x8xf32, #tpu.memory_space<vmem>>, vector<32x8xf32>
      %c0_12 = arith.constant 0 : index
      %c0_13 = arith.constant 0 : index
      %14 = vector.load %arg4[%c0_12, %c0_13] : memref<32x1xf32, #tpu.memory_space<vmem>>, vector<32x1xf32>
      %15 = vector.broadcast %14 : vector<32x1xf32> to vector<32x8xf32>
      %16 = arith.addf %13, %15 : vector<32x8xf32>
      %17 = arith.negf %16 : vector<32x8xf32>
      %18 = math.exp %17 : vector<32x8xf32>
      %cst_14 = arith.constant 1.000000e+00 : f32
      %19 = vector.broadcast %cst_14 : f32 to vector<32x8xf32>
      %20 = arith.addf %19, %18 : vector<32x8xf32>
      %21 = arith.divf %19, %20 : vector<32x8xf32>
      %c0_15 = arith.constant 0 : index
      %c0_16 = arith.constant 0 : index
      %22 = vector.load %arg5[%c0_15, %c0_16] : memref<1x32xf32, #tpu.memory_space<vmem>>, vector<1x32xf32>
      %cst_17 = arith.constant dense<0.000000e+00> : vector<1x8xf32>
      %23 = tpu.matmul %22, %21, %cst_17 {dimension_numbers = #tpu.dot_dimension_numbers<[1], [0], [0], [1], [0, 0, 1, 1], [], []>} : vector<1x32xf32>, vector<32x8xf32>, vector<1x8xf32> -> vector<1x8xf32>
      %c0_18 = arith.constant 0 : index
      %24 = memref.load %arg6[%c0_18] : memref<1xf32, #tpu.memory_space<smem>>
      %25 = vector.broadcast %24 : f32 to vector<1x8xf32>
      %26 = arith.addf %23, %25 : vector<1x8xf32>
      %27 = arith.negf %26 : vector<1x8xf32>
      %28 = math.exp %27 : vector<1x8xf32>
      %cst_19 = arith.constant 1.000000e+00 : f32
      %29 = vector.broadcast %cst_19 : f32 to vector<1x8xf32>
      %30 = arith.addf %29, %28 : vector<1x8xf32>
      %31 = arith.divf %29, %30 : vector<1x8xf32>
      %c0_20 = arith.constant 0 : index
      %c0_21 = arith.constant 0 : index
      %32 = vector.load %arg7[%c0_20, %c0_21] : memref<1x8xf32, #tpu.memory_space<vmem>>, vector<1x8xf32>
      tpu.vector_store %arg7[%c0_20, %c0_21], %31 {strides = array<i32>} : memref<1x8xf32, #tpu.memory_space<vmem>>, vector<1x8xf32>,
    } else {
    }
    return
  }
  func.func @transform_0(%arg0: i32, %arg1: i32) -> (i32, i32) {
    %c0_i32 = arith.constant 0 : i32
    return %arg0, %arg1 : i32, i32
  }
  func.func @transform_1(%arg0: i32, %arg1: i32) -> (i32, i32) {
    %c0_i32 = arith.constant 0 : i32
    %c0_i32_0 = arith.constant 0 : i32
    return %c0_i32, %arg1 : i32, i32
  }
  func.func @transform_2(%arg0: i32, %arg1: i32) -> (i32, i32) {
    %c0_i32 = arith.constant 0 : i32
    %c0_i32_0 = arith.constant 0 : i32
    %c0_i32_1 = arith.constant 0 : i32
    return %c0_i32, %c0_i32_0 : i32, i32
  }
  func.func @transform_3(%arg0: i32, %arg1: i32) -> (i32, i32) {
    %c0_i32 = arith.constant 0 : i32
    %c0_i32_0 = arith.constant 0 : i32
    %c0_i32_1 = arith.constant 0 : i32
    return %c0_i32, %c0_i32_0 : i32, i32
  }
  func.func @transform_4(%arg0: i32, %arg1: i32) -> i32 {
    %c0_i32 = arith.constant 0 : i32
    %c0_i32_0 = arith.constant 0 : i32
    return %c0_i32 : i32
  }
  func.func @transform_5(%arg0: i32, %arg1: i32) -> (i32, i32) {
    %c0_i32 = arith.constant 0 : i32
    %c0_i32_0 = arith.constant 0 : i32
    return %c0_i32, %arg0 : i32, i32
  }
}

</mosaic_0001>

<llo_original>
// kernel: tpu_custom_call.1
$region0: #{tpu_custom_call.1}
  #allocation0 [shape = 'u32[]', space=smem, size = 0x4, offset = 0x4, fixed_abs, tag = 'smem constant byte address 0x4 - core index']
  #allocation1 [shape = 'u32[144,128]{1,0:T(1,128)}', space=vmem, size = 0x12000, scoped, tag = 'internal scratch']
  #allocation2 [shape = 'f32[32,8]{1,0:T(8,128)}', space=vmem, size = 0x4000, scoped, tag = 'scratch operand']
  #allocation3 [shape = 'f32[1]{0:T(128)S(6)}', space=smem, size = 0x200, scoped, tag = 'scoped memory for tpu_custom_call.1']
  %s0 = inlined_call_operand.vmem [shape: f32[8,16], index: 0, kind: input, shape index: {}]
  %s1 = inlined_call_operand.vmem [shape: bf16[32,16], index: 1, kind: input, shape index: {}]
  %s2 = inlined_call_operand.vmem [shape: f32[32,1], index: 2, kind: input, shape index: {}]
  %s3 = inlined_call_operand.vmem [shape: f32[1,32], index: 3, kind: input, shape index: {}]
  %s4 = inlined_call_operand.<no memory space> [shape: f32[1], index: 4, kind: input, shape index: {}]
  %s5 = inlined_call_operand.hbm [shape: f32[1,8], index: 5, kind: output, shape index: {}]
  %s6 = sld [smem:[#allocation0]]
  $region38: #{tpu_custom_call.1} parent=0
    _
  %s8 = ssub.s32 1, %s6
  %s9 = scalar_select 0, %s8, %s6
  %10 = sst [smem:[#allocation3]] %s4
  $region1: #{tpu_custom_call.1} parent=0
    #allocation4 [shape = 'u8[512]{0}', space=vmem, size = 0x400, scoped, tag = 'output window, operand 0, single buffered']
    #allocation5 [shape = 's32[1]{0}', space=sflag, size = 0x4, scoped, tag = 'scoped memory for tpu_custom_call.1']
    %11 = vsyncpa [#allocation5], 0
    // Predicated region
    $region2: #{tpu_custom_call.1} parent=1 // pred_check
      _
    $region3: #{tpu_custom_call.1} parent=1 // pred_check_branch
      %13 = sbr.rel (0) target = $region5
    $region4: #{tpu_custom_call.1} parent=1 // pred_region
      _
    $region5: #{tpu_custom_call.1} parent=1 // pred_fallthru
      _
    // Predicated region
    $region6: #{tpu_custom_call.1} parent=1 // pred_check
      _
    $region7: #{tpu_custom_call.1} parent=1 // pred_check_branch
      %15 = sbr.rel (0) target = $region9
    $region8: #{tpu_custom_call.1} parent=1 // pred_region
      _
    $region9: #{tpu_custom_call.1} parent=1 // pred_fallthru
      _
    // Predicated region
    $region10: #{tpu_custom_call.1} parent=1 // pred_check
      _
    $region11: #{tpu_custom_call.1} parent=1 // pred_check_branch
      %17 = sbr.rel (0) target = $region13
    $region12: #{tpu_custom_call.1} parent=1 // pred_region
      _
    $region13: #{tpu_custom_call.1} parent=1 // pred_fallthru
      _
    // Predicated region
    $region14: #{tpu_custom_call.1} parent=1 // pred_check
      _
    $region15: #{tpu_custom_call.1} parent=1 // pred_check_branch
      %19 = sbr.rel (0) target = $region17
    $region16: #{tpu_custom_call.1} parent=1 // pred_region
      _
    $region17: #{tpu_custom_call.1} parent=1 // pred_fallthru
      _
    // Predicated region
    $region18: #{tpu_custom_call.1} parent=1 // pred_check
      _
    $region19: #{tpu_custom_call.1} parent=1 // pred_check_branch
      %21 = sbr.rel (0) target = $region21
    $region20: #{tpu_custom_call.1} parent=1 // pred_region
      _
    $region21: #{tpu_custom_call.1} parent=1 // pred_fallthru
      _
    %p23 = scmp.eq.s32.totalorder 0, 0
    // Predicated region
    $region22: #{tpu_custom_call.1} parent=1 // pred_check
      %p24 = pneg %p23
    $region23: #{tpu_custom_call.1} parent=1 // pred_check_branch
      %26 = sbr.rel (%p24) target = $region25
    $region24: #{tpu_custom_call.1} parent=1 // pred_region
      %vm27 = vcmask 64512
      %28 = vst.msk [vmem:[#allocation2] sm:$0xff] %vm27, 0.0
      %29 = vst.msk [vmem:[#allocation2 + $0x8] sm:$0xff] %vm27, 0.0
      %30 = vst.msk [vmem:[#allocation2 + $0x10] sm:$0xff] %vm27, 0.0
      %31 = vst.msk [vmem:[#allocation2 + $0x18] sm:$0xff] %vm27, 0.0
    $region25: #{tpu_custom_call.1} parent=1 // pred_fallthru
      _
    %v32 = vld [vmem:[%s0] sm:$0xff]
    %v33 = vpack.c.bf16 %v32, %v32
    %v34 = vld [vmem:[#allocation2] sm:$0xff]
    %v35 = vld [vmem:[#allocation2 + $0x8] sm:$0xff]
    %v36 = vld [vmem:[#allocation2 + $0x10] sm:$0xff]
    %v37 = vld [vmem:[#allocation2 + $0x18] sm:$0xff]
    %v38 = vld [vmem:[%s1] sm:$0xf]
    %v39 = vld [vmem:[%s1 + $0x4] sm:$0xf]
    %v40 = vld [vmem:[%s1 + $0x8] sm:$0xf]
    %v41 = vld [vmem:[%s1 + $0xc] sm:$0xf]
    %v46 = vunpack.c.l.b16 %v38
    %v47 = vunpack.c.l.b16 %v39
    %v48 = vunpack.c.l.b16 %v40
    %v49 = vunpack.c.l.b16 %v41
    %v50 = vpack.c.b16 %v47, %v46
    %v51 = vpack.c.b16 %v49, %v48
    %vm52 = vcmask 130048
    %v54 = vsel %vm52, %v50, 0
    %v57 = vsel %vm52, %v51, 0
    %v60 = vsel %vm52, %v33, 0
    %62 = vmatprep.subr.bf16.mxu0 0
    %63 = vmatpush1.bf16.xpose.msra.mxu0 %v60
    %64 = vmatprep.subr.bf16.mxu0 0
    %65 = vmatpush1.bf16.xpose.msra.mxu0 0
    %66 = vmatprep.subr.bf16.mxu0 0
    %67 = vmatpush1.bf16.xpose.msra.mxu0 0
    %68 = vmatprep.subr.bf16.mxu0 0
    %69 = vmatpush1.bf16.xpose.msra.mxu0 0
    %70 = vmatprep.subr.bf16.mxu0 0
    %71 = vmatpush1.bf16.xpose.msra.mxu0 0
    %72 = vmatprep.subr.bf16.mxu0 0
    %73 = vmatpush1.bf16.xpose.msra.mxu0 0
    %74 = vmatprep.subr.bf16.mxu0 0
    %75 = vmatpush1.bf16.xpose.msra.mxu0 0
    %76 = vmatprep.subr.bf16.mxu0 0
    %77 = vmatpush1.bf16.xpose.msra.mxu0 0
    %78 = vmatprep.subr.bf16.mxu0 0
    %79 = vmatpush1.bf16.xpose.msra.mxu0 0
    %80 = vmatprep.subr.bf16.mxu0 0
    %81 = vmatpush1.bf16.xpose.msra.mxu0 0
    %82 = vmatprep.subr.bf16.mxu0 0
    %83 = vmatpush1.bf16.xpose.msra.mxu0 0
    %84 = vmatprep.subr.bf16.mxu0 0
    %85 = vmatpush1.bf16.xpose.msra.mxu0 0
    %86 = vmatprep.subr.bf16.mxu0 0
    %87 = vmatpush1.bf16.xpose.msra.mxu0 0
    %88 = vmatprep.subr.bf16.mxu0 0
    %89 = vmatpush1.bf16.xpose.msra.mxu0 0
    %90 = vmatprep.subr.bf16.mxu0 0
    %91 = vmatpush1.bf16.xpose.msra.mxu0 0
    %92 = vmatprep.subr.bf16.mxu0 0
    %93 = vmatpush1.bf16.xpose.msra.mxu0 0
    %94 = vmatprep.mubr.bf16.mxu0 0
    %95 = vmatmul.mubr.bf16.gmra.mrb[0].mxu0 %v54
    %v96 = vpop.f32.mrb[0].mxu0
    %v97 = vadd.f32 0.0, %v96
    %v98 = vpop.f32.mrb[0].mxu0
    %v99 = vpop.f32.mrb[0].mxu0
    %v100 = vadd.f32 0.0, %v99
    %v101 = vpop.f32.mrb[0].mxu0
    %102 = vmatprep.mubr.bf16.mxu0 0
    %103 = vmatmul.mubr.bf16.gmra.mrb[0].mxu0 %v57
    %v104 = vpop.f32.mrb[0].mxu0
    %v105 = vadd.f32 0.0, %v104
    %v106 = vpop.f32.mrb[0].mxu0
    %v107 = vpop.f32.mrb[0].mxu0
    %v108 = vadd.f32 0.0, %v107
    %v109 = vpop.f32.mrb[0].mxu0
    %110 = vdwg.mxu0
    %v111 = vadd.f32 %v34, %v97
    %v112 = vadd.f32 %v35, %v100
    %v113 = vadd.f32 %v36, %v105
    %v114 = vadd.f32 %v37, %v108
    %vm115 = vcmask 64512
    %116 = vst.msk [vmem:[#allocation2] sm:$0xff] %vm115, %v111
    %117 = vst.msk [vmem:[#allocation2 + $0x8] sm:$0xff] %vm115, %v112
    %118 = vst.msk [vmem:[#allocation2 + $0x10] sm:$0xff] %vm115, %v113
    %119 = vst.msk [vmem:[#allocation2 + $0x18] sm:$0xff] %vm115, %v114
    // Predicated region
    $region26: #{tpu_custom_call.1} parent=1 // pred_check
      %p120 = pneg %p23
    $region27: #{tpu_custom_call.1} parent=1 // pred_check_branch
      %122 = sbr.rel (%p120) target = $region29
    $region28: #{tpu_custom_call.1} parent=1 // pred_region
      %v123 = vld [vmem:[#allocation2] sm:$0xff]
      %v124 = vld [vmem:[#allocation2 + $0x8] sm:$0xff]
      %v125 = vld [vmem:[#allocation2 + $0x10] sm:$0xff]
      %v126 = vld [vmem:[#allocation2 + $0x18] sm:$0xff]
      %v127 = vld [vmem:[%s2] sm:$0xff]
      %v128 = vld [vmem:[%s2 + $0x8] sm:$0xff]
      %v129 = vld [vmem:[%s2 + $0x10] sm:$0xff]
      %v130 = vld [vmem:[%s2 + $0x18] sm:$0xff]
      %132 = vset.pattern.permute.xlu0 0
      %133 = vperm.xlu0 %132, %v127
      %v134 = vpop.permute.xlu0 %133
      %137 = vset.pattern.permute.xlu0 0
      %138 = vperm.xlu0 %137, %v128
      %v139 = vpop.permute.xlu0 %138
      %142 = vset.pattern.permute.xlu0 0
      %143 = vperm.xlu0 %142, %v129
      %v144 = vpop.permute.xlu0 %143
      %147 = vset.pattern.permute.xlu0 0
      %148 = vperm.xlu0 %147, %v130
      %v149 = vpop.permute.xlu0 %148
      %v151 = vadd.f32 %v123, %v134
      %v152 = vadd.f32 %v124, %v139
      %v153 = vadd.f32 %v125, %v144
      %v154 = vadd.f32 %v126, %v149
      %v155 = vxor.u32 %v151, 2147483648
      %v156 = vxor.u32 %v152, 2147483648
      %v157 = vxor.u32 %v153, 2147483648
      %v158 = vxor.u32 %v154, 2147483648
      %v159 = vmul.f32 %v155, 1.442695
      %v160 = vpow.pop %v159
      %v161 = vmul.f32 %v156, 1.442695
      %v162 = vpow.pop %v161
      %v163 = vmul.f32 %v157, 1.442695
      %v164 = vpow.pop %v163
      %v165 = vmul.f32 %v158, 1.442695
      %v166 = vpow.pop %v165
      %v167 = vadd.f32 %v160, 1.0
      %v168 = vadd.f32 %v162, 1.0
      %v169 = vadd.f32 %v164, 1.0
      %v170 = vadd.f32 %v166, 1.0
      %v171 = vrcp.pop %v167
      %v172 = vmul.f32 1.0, %v171
      %v173 = vrcp.pop %v168
      %v174 = vmul.f32 1.0, %v173
      %v175 = vrcp.pop %v169
      %v176 = vmul.f32 1.0, %v175
      %v177 = vrcp.pop %v170
      %v178 = vmul.f32 1.0, %v177
      %v179 = vld [vmem:[%s3] sm:$0x1]
      %s180 = sld [smem:[#allocation3]]
      %v181 = vstv %s180
      %vm182 = vcmask 261120
      %v184 = vsel %vm182, %v179, 0
      %186 = vmatprep.subr.mxu0 0.0
      %187 = vmatpush1.msra.mxu0 %v172
      %188 = vmatprep.subr.mxu0 0.0
      %189 = vmatpush1.msra.mxu0 %v174
      %190 = vmatprep.subr.mxu0 0.0
      %191 = vmatpush1.msra.mxu0 %v176
      %192 = vmatprep.subr.mxu0 0.0
      %193 = vmatpush1.msra.mxu0 %v178
      %194 = vmatprep.subr.mxu0 0.0
      %195 = vmatpush1.msra.mxu0 0.0
      %196 = vmatprep.subr.mxu0 0.0
      %197 = vmatpush1.msra.mxu0 0.0
      %198 = vmatprep.subr.mxu0 0.0
      %199 = vmatpush1.msra.mxu0 0.0
      %200 = vmatprep.subr.mxu0 0.0
      %201 = vmatpush1.msra.mxu0 0.0
      %202 = vmatprep.subr.mxu0 0.0
      %203 = vmatpush1.msra.mxu0 0.0
      %204 = vmatprep.subr.mxu0 0.0
      %205 = vmatpush1.msra.mxu0 0.0
      %206 = vmatprep.subr.mxu0 0.0
      %207 = vmatpush1.msra.mxu0 0.0
      %208 = vmatprep.subr.mxu0 0.0
      %209 = vmatpush1.msra.mxu0 0.0
      %210 = vmatprep.subr.mxu0 0.0
      %211 = vmatpush1.msra.mxu0 0.0
      %212 = vmatprep.subr.mxu0 0.0
      %213 = vmatpush1.msra.mxu0 0.0
      %214 = vmatprep.subr.mxu0 0.0
      %215 = vmatpush1.msra.mxu0 0.0
      %216 = vmatprep.subr.mxu0 0.0
      %217 = vmatpush1.msra.mxu0 0.0
      %218 = vmatprep.subr.mxu0 0.0
      %219 = vmatpush1.msra.mxu0 0.0
      %220 = vmatprep.subr.mxu0 0.0
      %221 = vmatpush1.msra.mxu0 0.0
      %222 = vmatprep.subr.mxu0 0.0
      %223 = vmatpush1.msra.mxu0 0.0
      %224 = vmatprep.subr.mxu0 0.0
      %225 = vmatpush1.msra.mxu0 0.0
      %226 = vmatprep.subr.mxu0 0.0
      %227 = vmatpush1.msra.mxu0 0.0
      %228 = vmatprep.subr.mxu0 0.0
      %229 = vmatpush1.msra.mxu0 0.0
      %230 = vmatprep.subr.mxu0 0.0
      %231 = vmatpush1.msra.mxu0 0.0
      %232 = vmatprep.subr.mxu0 0.0
      %233 = vmatpush1.msra.mxu0 0.0
      %234 = vmatprep.subr.mxu0 0.0
      %235 = vmatpush1.msra.mxu0 0.0
      %236 = vmatprep.subr.mxu0 0.0
      %237 = vmatpush1.msra.mxu0 0.0
      %238 = vmatprep.subr.mxu0 0.0
      %239 = vmatpush1.msra.mxu0 0.0
      %240 = vmatprep.subr.mxu0 0.0
      %241 = vmatpush1.msra.mxu0 0.0
      %242 = vmatprep.subr.mxu0 0.0
      %243 = vmatpush1.msra.mxu0 0.0
      %244 = vmatprep.subr.mxu0 0.0
      %245 = vmatpush1.msra.mxu0 0.0
      %246 = vmatprep.subr.mxu0 0.0
      %247 = vmatpush1.msra.mxu0 0.0
      %248 = vmatprep.subr.mxu0 0.0
      %249 = vmatpush1.msra.mxu0 0.0
      %250 = vmatprep.mubr.f32.mxu0 0.0
      %251 = vmatmul.mubr.f32.gmra.mrb[0].mxu0 %v184
      %v252 = vpop.f32.mrb[0].mxu0
      %v253 = vadd.f32 %v181, %v252
      %v254 = vpop.f32.mrb[0].mxu0
      %255 = vdwg.mxu0
      %v256 = vxor.u32 %v253, 2147483648
      %v257 = vmul.f32 %v256, 1.442695
      %v258 = vpow.pop %v257
      %v259 = vadd.f32 %v258, 1.0
      %v260 = vrcp.pop %v259
      %v261 = vmul.f32 1.0, %v260
      %vm262 = vcmask 57344
      %263 = vst.msk [vmem:[#allocation4] sm:$0x1] %vm262, %v261
    $region29: #{tpu_custom_call.1} parent=1 // pred_fallthru
      _
    // Predicated region
    $region30: #{tpu_custom_call.1} parent=1 // pred_check
      _
    $region31: #{tpu_custom_call.1} parent=1 // pred_check_branch
      %265 = sbr.rel (0) target = $region33
    $region32: #{tpu_custom_call.1} parent=1 // pred_region
      %s267 = ssub.s32 16, 16
      %268 = vsyncadd [#allocation5], %s267
      %s270 = sshll.u32 [#allocation4], 4
      %s271 = int_to_ptr.vmem [resolvable:$true] %s270
      %273 = dma.vmem_to_hbm [thread:$0]  %s271, 16, %s5, [#allocation5]
    $region33: #{tpu_custom_call.1} parent=1 // pred_fallthru
      _
    // Predicated region
    $region34: #{tpu_custom_call.1} parent=1 // pred_check
      _
    $region35: #{tpu_custom_call.1} parent=1 // pred_check_branch
      %275 = sbr.rel (0) target = $region37
    $region36: #{tpu_custom_call.1} parent=1 // pred_region
      %276 = dma.done [#allocation5], 16
    $region37: #{tpu_custom_call.1} parent=1 // pred_fallthru
      _
    %277 = vsyncpa [#allocation5], 1

</llo_original>
